<compile_context>
chip_gen: v6e
topology: v6e:2x2x1
jax: 0.10.0
libtpu: 0.0.40
codegen_flags: <defaults>
</compile_context>

<pallas_src>
import jax
import jax.numpy as jnp
import numpy as np
from jax.experimental import pallas as pl
from jax.experimental.pallas import tpu as pltpu

_LANES = 128


def _coxph_kernel(nv_ref, data_ref, out_ref):
    """nv_ref: SMEM (1,) i32; data_ref: VMEM (2R, 128) f32; out_ref: SMEM (1,) f32.

    data_ref rows [0, R)  : max-shifted risk, sorted by descending duration,
                            laid out row-major (sample i -> (i // 128, i % 128)).
                            Invalid samples carry -1e30 (exp underflows to 0);
                            pad lanes carry 0 and sit strictly after all samples.
    data_ref rows [R, 2R) : event indicator for valid samples, else 0.
    """
    two_r, nl = data_ref.shape
    r_rows = two_r // 2
    risk = data_ref[0:r_rows, :]          # (R, 128) 8-row-aligned slice (free)
    contrib = data_ref[r_rows:two_r, :]   # (R, 128)

    exp_r = jnp.exp(risk)                 # invalid lanes underflow to exactly 0

    # Level 1: inclusive prefix sum along lanes within each row.
    # Hillis-Steele scan out of XLU lane rotations; `lane >= s` compares an
    # iota against a trace-time constant (folds to a constant mask).
    lane = jax.lax.broadcasted_iota(jnp.int32, (r_rows, nl), 1)
    csum = exp_r
    s = 1
    while s < nl:                         # 7 static steps
        rolled = pltpu.roll(csum, s, 1)   # rolled[r, l] = csum[r, l - s]
        csum = csum + jnp.where(lane >= s, rolled, 0.0)
        s *= 2

    # Level 2: exclusive prefix sum of per-row totals across rows
    # (sublane rolls on the lane-broadcast totals; ceil(log2(R)) static steps).
    row = jax.lax.broadcasted_iota(jnp.int32, (r_rows, nl), 0)
    totals = jnp.broadcast_to(csum[:, nl - 1:nl], (r_rows, nl))
    off = jnp.where(row >= 1, pltpu.roll(totals, 1, 0), 0.0)   # off[r] = tot[r-1]
    s = 1
    while s < r_rows:
        rolled = pltpu.roll(off, s, 0)    # rolled[r, l] = off[r - s, l]
        off = off + jnp.where(row >= s, rolled, 0.0)
        s *= 2
    csum = csum + off                     # full inclusive prefix sum over samples

    # log() is only consumed where contrib != 0, where csum > 0 always holds;
    # the guard just keeps an all-invalid batch NaN-free.
    safe = jnp.where(csum > 0.0, csum, 1.0)
    ll = contrib * (risk - jnp.log(safe))
    total = jnp.sum(ll)

    nv = nv_ref[0]
    nv_f = jnp.maximum(nv.astype(jnp.float32), 1.0)
    out_ref[0] = jnp.where(nv > 0, -total / nv_f, 0.0)


@jax.jit
def coxph_loss(risk, duration, event):
    """Negative Cox partial log-likelihood, matching the PyTorch CoxPHLoss."""
    risk = jnp.atleast_1d(jnp.squeeze(jnp.asarray(risk, jnp.float32)))
    duration = jnp.asarray(duration, jnp.float32)
    event = jnp.asarray(event, jnp.float32)

    b = risk.shape[0]
    rows = (b + _LANES - 1) // _LANES
    r_rows = ((rows + 7) // 8) * 8        # 8-row-aligned dense layout
    npad = r_rows * _LANES

    valid = (duration != -1.0) & (event != -1.0)
    n_valid = jnp.sum(valid).astype(jnp.int32).reshape(1)

    # Loss is invariant to a constant shift of risk; shift by the max valid
    # risk so exp() in the kernel cannot overflow.  Invalid samples get -1e30
    # so their exp() underflows to exactly 0 (replaces the old `valid` plane).
    m = jnp.max(jnp.where(valid, risk, -jnp.inf))
    m = jnp.where(jnp.isfinite(m), m, 0.0)
    risk_sh = jnp.where(valid, risk - m, jnp.float32(-1e30))
    contrib = jnp.where(valid, event, 0.0)

    # Stable descending sort by duration; invalid rows (-inf key) go last, so
    # zero-padded tail lanes (exp()=1, contrib=0) sit strictly after every real
    # sample and never enter a real sample's risk set.
    order = jnp.argsort(jnp.where(valid, duration, -jnp.inf),
                        descending=True, stable=True)

    stacked = jnp.stack([risk_sh, contrib])                 # (2, B)
    gathered = jnp.take(stacked, order, axis=1)             # ONE gather for both planes
    data = jnp.pad(gathered, ((0, 0), (0, npad - b))).reshape(2 * r_rows, _LANES)

    out = pl.pallas_call(
        _coxph_kernel,
        out_shape=jax.ShapeDtypeStruct((1,), jnp.float32),
        in_specs=[
            pl.BlockSpec(memory_space=pltpu.MemorySpace.SMEM),    # n_valid
            pl.BlockSpec((2 * r_rows, _LANES), lambda: (0, 0)),   # fused slab
        ],
        out_specs=pl.BlockSpec(memory_space=pltpu.MemorySpace.SMEM),
    )(n_valid, data)
    return out[0]


def _reference_numpy(risk, duration, event):
    """Pure-numpy transcription of the PyTorch forward (silent check)."""
    risk = np.asarray(risk, np.float32).squeeze()
    duration = np.asarray(duration, np.float32)
    event = np.asarray(event, np.float32)
    mask = (duration != -1) & (event != -1)
    if mask.sum() == 0:
        return np.float32(0.0)
    duration, event, risk = duration[mask], event[mask], risk[mask]
    idx = np.argsort(-duration, kind="stable")
    duration, event, risk = duration[idx], event[idx], risk[idx]
    exp_risk_sum = np.cumsum(np.exp(risk))
    ll = (risk - np.log(exp_risk_sum)) * event
    return np.float32(-np.mean(ll))


if __name__ == "__main__":
    key = jax.random.PRNGKey(0)
    k_risk, k_r2, k_d2, k_e2, k_r3, k_d3, k_e3 = jax.random.split(key, 7)

    # Case 1: B=8, one invalid duration and one invalid event, distinct durations.
    B = 8
    risk = jax.random.normal(k_risk, (B, 1), dtype=jnp.float32)
    duration = jnp.array([5.0, 3.0, -1.0, 9.0, 2.0, 7.0, 4.0, 6.0], jnp.float32)
    event = jnp.array([1.0, 0.0, 1.0, 1.0, -1.0, 0.0, 1.0, 1.0], jnp.float32)
    loss = jax.block_until_ready(coxph_loss(risk, duration, event))
    ref = _reference_numpy(np.asarray(risk), np.asarray(duration), np.asarray(event))
    np.testing.assert_allclose(np.asarray(loss), ref, rtol=1e-5, atol=1e-5)

    # Case 2: B=16, all valid, continuous durations (no ties), mixed events.
    B2 = 16
    risk2 = jax.random.normal(k_r2, (B2, 1), dtype=jnp.float32)
    duration2 = jax.random.uniform(k_d2, (B2,), dtype=jnp.float32,
                                   minval=0.1, maxval=10.0)
    event2 = (jax.random.uniform(k_e2, (B2,)) < 0.6).astype(jnp.float32)
    loss2 = jax.block_until_ready(coxph_loss(risk2, duration2, event2))
    ref2 = _reference_numpy(np.asarray(risk2), np.asarray(duration2),
                            np.asarray(event2))
    np.testing.assert_allclose(np.asarray(loss2), ref2, rtol=1e-5, atol=1e-5)

    # Case 3: B=200 (spans two 128-lane rows) to exercise the cross-row offset
    # pass of the two-level scan; a couple of invalid samples mixed in.
    B3 = 200
    risk3 = jax.random.normal(k_r3, (B3, 1), dtype=jnp.float32)
    duration3 = jax.random.uniform(k_d3, (B3,), dtype=jnp.float32,
                                   minval=0.1, maxval=50.0)
    event3 = (jax.random.uniform(k_e3, (B3,)) < 0.5).astype(jnp.float32)
    duration3 = duration3.at[7].set(-1.0)
    event3 = event3.at[123].set(-1.0)
    loss3 = jax.block_until_ready(coxph_loss(risk3, duration3, event3))
    ref3 = _reference_numpy(np.asarray(risk3), np.asarray(duration3),
                            np.asarray(event3))
    np.testing.assert_allclose(np.asarray(loss3), ref3, rtol=2e-4, atol=2e-5)

    print("KERNEL_OK")
</pallas_src>

<mosaic_0001>
module attributes {stable_mosaic.version = 11 : i64} {
  func.func @_coxph_kernel(%arg0: memref<1xi32, #tpu.memory_space<smem>>, %arg1: memref<16x128xf32, #tpu.memory_space<vmem>>, %arg2: memref<1xf32, #tpu.memory_space<smem>>) attributes {dimension_semantics = [], scalar_prefetch = 0 : i64, scratch_operands = 0 : i64, tpu.core_type = #tpu.core_type<tc>} {
    %c0 = arith.constant 0 : index
    %c0_0 = arith.constant 0 : index
    %0 = vector.load %arg1[%c0, %c0_0] : memref<16x128xf32, #tpu.memory_space<vmem>>, vector<8x128xf32>
    %c8 = arith.constant 8 : index
    %c0_1 = arith.constant 0 : index
    %1 = vector.load %arg1[%c8, %c0_1] : memref<16x128xf32, #tpu.memory_space<vmem>>, vector<8x128xf32>
    %2 = math.exp %0 : vector<8x128xf32>
    %3 = tpu.iota {dimensions = array<i32: 1>} : vector<8x128xi32>
    %c1_i32 = arith.constant 1 : i32
    %4 = tpu.dynamic_rotate %2 by %c1_i32 dim 1 : vector<8x128xf32>, i32 -> vector<8x128xf32>
    %c1_i32_2 = arith.constant 1 : i32
    %5 = vector.broadcast %c1_i32_2 : i32 to vector<8x128xi32>
    %6 = arith.cmpi sge, %3, %5 : vector<8x128xi32>
    %cst = arith.constant 0.000000e+00 : f32
    %7 = vector.broadcast %cst : f32 to vector<8x128xf32>
    %8 = arith.select %6, %4, %7 : vector<8x128xi1>, vector<8x128xf32>
    %9 = arith.addf %2, %8 : vector<8x128xf32>
    %c2_i32 = arith.constant 2 : i32
    %10 = tpu.dynamic_rotate %9 by %c2_i32 dim 1 : vector<8x128xf32>, i32 -> vector<8x128xf32>
    %c2_i32_3 = arith.constant 2 : i32
    %11 = vector.broadcast %c2_i32_3 : i32 to vector<8x128xi32>
    %12 = arith.cmpi sge, %3, %11 : vector<8x128xi32>
    %cst_4 = arith.constant 0.000000e+00 : f32
    %13 = vector.broadcast %cst_4 : f32 to vector<8x128xf32>
    %14 = arith.select %12, %10, %13 : vector<8x128xi1>, vector<8x128xf32>
    %15 = arith.addf %9, %14 : vector<8x128xf32>
    %c4_i32 = arith.constant 4 : i32
    %16 = tpu.dynamic_rotate %15 by %c4_i32 dim 1 : vector<8x128xf32>, i32 -> vector<8x128xf32>
    %c4_i32_5 = arith.constant 4 : i32
    %17 = vector.broadcast %c4_i32_5 : i32 to vector<8x128xi32>
    %18 = arith.cmpi sge, %3, %17 : vector<8x128xi32>
    %cst_6 = arith.constant 0.000000e+00 : f32
    %19 = vector.broadcast %cst_6 : f32 to vector<8x128xf32>
    %20 = arith.select %18, %16, %19 : vector<8x128xi1>, vector<8x128xf32>
    %21 = arith.addf %15, %20 : vector<8x128xf32>
    %c8_i32 = arith.constant 8 : i32
    %22 = tpu.dynamic_rotate %21 by %c8_i32 dim 1 : vector<8x128xf32>, i32 -> vector<8x128xf32>
    %c8_i32_7 = arith.constant 8 : i32
    %23 = vector.broadcast %c8_i32_7 : i32 to vector<8x128xi32>
    %24 = arith.cmpi sge, %3, %23 : vector<8x128xi32>
    %cst_8 = arith.constant 0.000000e+00 : f32
    %25 = vector.broadcast %cst_8 : f32 to vector<8x128xf32>
    %26 = arith.select %24, %22, %25 : vector<8x128xi1>, vector<8x128xf32>
    %27 = arith.addf %21, %26 : vector<8x128xf32>
    %c16_i32 = arith.constant 16 : i32
    %28 = tpu.dynamic_rotate %27 by %c16_i32 dim 1 : vector<8x128xf32>, i32 -> vector<8x128xf32>
    %c16_i32_9 = arith.constant 16 : i32
    %29 = vector.broadcast %c16_i32_9 : i32 to vector<8x128xi32>
    %30 = arith.cmpi sge, %3, %29 : vector<8x128xi32>
    %cst_10 = arith.constant 0.000000e+00 : f32
    %31 = vector.broadcast %cst_10 : f32 to vector<8x128xf32>
    %32 = arith.select %30, %28, %31 : vector<8x128xi1>, vector<8x128xf32>
    %33 = arith.addf %27, %32 : vector<8x128xf32>
    %c32_i32 = arith.constant 32 : i32
    %34 = tpu.dynamic_rotate %33 by %c32_i32 dim 1 : vector<8x128xf32>, i32 -> vector<8x128xf32>
    %c32_i32_11 = arith.constant 32 : i32
    %35 = vector.broadcast %c32_i32_11 : i32 to vector<8x128xi32>
    %36 = arith.cmpi sge, %3, %35 : vector<8x128xi32>
    %cst_12 = arith.constant 0.000000e+00 : f32
    %37 = vector.broadcast %cst_12 : f32 to vector<8x128xf32>
    %38 = arith.select %36, %34, %37 : vector<8x128xi1>, vector<8x128xf32>
    %39 = arith.addf %33, %38 : vector<8x128xf32>
    %c64_i32 = arith.constant 64 : i32
    %40 = tpu.dynamic_rotate %39 by %c64_i32 dim 1 : vector<8x128xf32>, i32 -> vector<8x128xf32>
    %c64_i32_13 = arith.constant 64 : i32
    %41 = vector.broadcast %c64_i32_13 : i32 to vector<8x128xi32>
    %42 = arith.cmpi sge, %3, %41 : vector<8x128xi32>
    %cst_14 = arith.constant 0.000000e+00 : f32
    %43 = vector.broadcast %cst_14 : f32 to vector<8x128xf32>
    %44 = arith.select %42, %40, %43 : vector<8x128xi1>, vector<8x128xf32>
    %45 = arith.addf %39, %44 : vector<8x128xf32>
    %46 = tpu.iota {dimensions = array<i32: 0>} : vector<8x128xi32>
    %47 = vector.extract_strided_slice %45 {offsets = [0, 127], sizes = [8, 1], strides = [1, 1]} : vector<8x128xf32> to vector<8x1xf32>
    %48 = vector.shape_cast %47 : vector<8x1xf32> to vector<8x1xf32>
    %49 = vector.broadcast %48 : vector<8x1xf32> to vector<8x128xf32>
    %c1_i32_15 = arith.constant 1 : i32
    %50 = vector.broadcast %c1_i32_15 : i32 to vector<8x128xi32>
    %51 = arith.cmpi sge, %46, %50 : vector<8x128xi32>
    %c1_i32_16 = arith.constant 1 : i32
    %52 = tpu.dynamic_rotate %49 by %c1_i32_16 dim 0 : vector<8x128xf32>, i32 -> vector<8x128xf32>
    %cst_17 = arith.constant 0.000000e+00 : f32
    %53 = vector.broadcast %cst_17 : f32 to vector<8x128xf32>
    %54 = arith.select %51, %52, %53 : vector<8x128xi1>, vector<8x128xf32>
    %c1_i32_18 = arith.constant 1 : i32
    %55 = tpu.dynamic_rotate %54 by %c1_i32_18 dim 0 : vector<8x128xf32>, i32 -> vector<8x128xf32>
    %c1_i32_19 = arith.constant 1 : i32
    %56 = vector.broadcast %c1_i32_19 : i32 to vector<8x128xi32>
    %57 = arith.cmpi sge, %46, %56 : vector<8x128xi32>
    %cst_20 = arith.constant 0.000000e+00 : f32
    %58 = vector.broadcast %cst_20 : f32 to vector<8x128xf32>
    %59 = arith.select %57, %55, %58 : vector<8x128xi1>, vector<8x128xf32>
    %60 = arith.addf %54, %59 : vector<8x128xf32>
    %c2_i32_21 = arith.constant 2 : i32
    %61 = tpu.dynamic_rotate %60 by %c2_i32_21 dim 0 : vector<8x128xf32>, i32 -> vector<8x128xf32>
    %c2_i32_22 = arith.constant 2 : i32
    %62 = vector.broadcast %c2_i32_22 : i32 to vector<8x128xi32>
    %63 = arith.cmpi sge, %46, %62 : vector<8x128xi32>
    %cst_23 = arith.constant 0.000000e+00 : f32
    %64 = vector.broadcast %cst_23 : f32 to vector<8x128xf32>
    %65 = arith.select %63, %61, %64 : vector<8x128xi1>, vector<8x128xf32>
    %66 = arith.addf %60, %65 : vector<8x128xf32>
    %c4_i32_24 = arith.constant 4 : i32
    %67 = tpu.dynamic_rotate %66 by %c4_i32_24 dim 0 : vector<8x128xf32>, i32 -> vector<8x128xf32>
    %c4_i32_25 = arith.constant 4 : i32
    %68 = vector.broadcast %c4_i32_25 : i32 to vector<8x128xi32>
    %69 = arith.cmpi sge, %46, %68 : vector<8x128xi32>
    %cst_26 = arith.constant 0.000000e+00 : f32
    %70 = vector.broadcast %cst_26 : f32 to vector<8x128xf32>
    %71 = arith.select %69, %67, %70 : vector<8x128xi1>, vector<8x128xf32>
    %72 = arith.addf %66, %71 : vector<8x128xf32>
    %73 = arith.addf %45, %72 : vector<8x128xf32>
    %cst_27 = arith.constant 0.000000e+00 : f32
    %74 = vector.broadcast %cst_27 : f32 to vector<8x128xf32>
    %75 = arith.cmpf ogt, %73, %74 : vector<8x128xf32>
    %cst_28 = arith.constant 1.000000e+00 : f32
    %76 = vector.broadcast %cst_28 : f32 to vector<8x128xf32>
    %77 = arith.select %75, %73, %76 : vector<8x128xi1>, vector<8x128xf32>
    %78 = math.log %77 : vector<8x128xf32>
    %79 = arith.subf %0, %78 : vector<8x128xf32>
    %80 = arith.mulf %1, %79 : vector<8x128xf32>
    %81 = vector.shape_cast %80 : vector<8x128xf32> to vector<1x8x128xf32>
    %cst_29 = arith.constant dense<0.000000e+00> : vector<1xf32>
    %82 = vector.multi_reduction <add>, %81, %cst_29 [1, 2] : vector<1x8x128xf32> to vector<1xf32>
    %83 = vector.shape_cast %82 : vector<1xf32> to vector<1x1x1xf32>
    %84 = vector.extract %83[0, 0, 0] : f32 from vector<1x1x1xf32>
    %c0_30 = arith.constant 0 : index
    %85 = memref.load %arg0[%c0_30] : memref<1xi32, #tpu.memory_space<smem>>
    %86 = arith.sitofp %85 : i32 to f32
    %cst_31 = arith.constant 1.000000e+00 : f32
    %87 = arith.maximumf %86, %cst_31 : f32
    %c0_i32 = arith.constant 0 : i32
    %88 = arith.cmpi sgt, %85, %c0_i32 : i32
    %cst_32 = arith.constant 0.000000e+00 : f32
    %89 = arith.subf %cst_32, %84 : f32
    %90 = arith.divf %89, %87 : f32
    %cst_33 = arith.constant 0.000000e+00 : f32
    %91 = arith.select %88, %90, %cst_33 : f32
    %c0_34 = arith.constant 0 : index
    %92 = memref.load %arg2[%c0_34] : memref<1xf32, #tpu.memory_space<smem>>
    memref.store %91, %arg2[%c0_34] : memref<1xf32, #tpu.memory_space<smem>>
    return
  }
}

</mosaic_0001>

<llo_original>
// kernel: coxph_loss.1
$region0: #{coxph_loss.1}
  #allocation0 [shape = 'u32[]', space=smem, size = 0x4, offset = 0x4, fixed_abs, tag = 'smem constant byte address 0x4 - core index']
  #allocation1 [shape = 'u32[144,128]{1,0:T(1,128)}', space=vmem, size = 0x12000, scoped, tag = 'internal scratch']
  #allocation2 [shape = 's32[1]{0:T(128)S(6)}', space=smem, size = 0x200, scoped, tag = 'scoped memory for coxph_loss.1']
  %s0 = inlined_call_operand.<no memory space> [shape: s32[1], index: 0, kind: input, shape index: {}]
  %s1 = inlined_call_operand.vmem [shape: f32[16,128], index: 1, kind: input, shape index: {}]
  %s2 = inlined_call_operand.hbm [shape: f32[1], index: 2, kind: output, shape index: {}]
  %s3 = sld [smem:[#allocation0]]
  $region18: #{coxph_loss.1} parent=0
    _
  %s5 = ssub.s32 1, %s3
  %s6 = scalar_select 0, %s5, %s3
  %7 = sst [smem:[#allocation2]] %s0
  $region1: #{coxph_loss.1} parent=0
    #allocation3 [shape = 'u8[512]{0}', space=smem, size = 0x200, scoped, tag = 'output window, operand 0, single buffered']
    #allocation4 [shape = 's32[1]{0}', space=sflag, size = 0x4, scoped, tag = 'scoped memory for coxph_loss.1']
    %8 = vsyncpa [#allocation4], 0
    // Predicated region
    $region2: #{coxph_loss.1} parent=1 // pred_check
      _
    $region3: #{coxph_loss.1} parent=1 // pred_check_branch
      %10 = sbr.rel (0) target = $region5
    $region4: #{coxph_loss.1} parent=1 // pred_region
      _
    $region5: #{coxph_loss.1} parent=1 // pred_fallthru
      _
    // Predicated region
    $region6: #{coxph_loss.1} parent=1 // pred_check
      _
    $region7: #{coxph_loss.1} parent=1 // pred_check_branch
      %12 = sbr.rel (0) target = $region9
    $region8: #{coxph_loss.1} parent=1 // pred_region
      _
    $region9: #{coxph_loss.1} parent=1 // pred_fallthru
      _
    %v13 = vld [vmem:[%s1] sm:$0xff]
    %v14 = vld [vmem:[%s1 + $0x8] sm:$0xff]
    %v15 = vmul.f32 %v13, 1.442695
    %v16 = vpow.pop %v15
    %v17 = vlaneseq
    %v18 = vand.u32 %v17, 127
    %19 = vrot.lane.b32.xlu0 %v16, 1
    %v20 = vpop.permute.xlu0 %19
    %vm21 = vcmp.ge.s32.totalorder %v18, 1
    %v22 = vsel %vm21, %v20, 0.0
    %v23 = vadd.f32 %v16, %v22
    %24 = vrot.lane.b32.xlu0 %v23, 2
    %v25 = vpop.permute.xlu0 %24
    %vm26 = vcmp.ge.s32.totalorder %v18, 2
    %v27 = vsel %vm26, %v25, 0.0
    %v28 = vadd.f32 %v23, %v27
    %29 = vrot.lane.b32.xlu0 %v28, 4
    %v30 = vpop.permute.xlu0 %29
    %vm31 = vcmp.ge.s32.totalorder %v18, 4
    %v32 = vsel %vm31, %v30, 0.0
    %v33 = vadd.f32 %v28, %v32
    %34 = vrot.lane.b32.xlu0 %v33, 8
    %v35 = vpop.permute.xlu0 %34
    %vm36 = vcmp.ge.s32.totalorder %v18, 8
    %v37 = vsel %vm36, %v35, 0.0
    %v38 = vadd.f32 %v33, %v37
    %39 = vrot.lane.b32.xlu0 %v38, 16
    %v40 = vpop.permute.xlu0 %39
    %vm41 = vcmp.ge.s32.totalorder %v18, 16
    %v42 = vsel %vm41, %v40, 0.0
    %v43 = vadd.f32 %v38, %v42
    %44 = vrot.lane.b32.xlu0 %v43, 32
    %v45 = vpop.permute.xlu0 %44
    %vm46 = vcmp.ge.s32.totalorder %v18, 32
    %v47 = vsel %vm46, %v45, 0.0
    %v48 = vadd.f32 %v43, %v47
    %49 = vrot.lane.b32.xlu0 %v48, 64
    %v50 = vpop.permute.xlu0 %49
    %vm51 = vcmp.ge.s32.totalorder %v18, 64
    %v52 = vsel %vm51, %v50, 0.0
    %v53 = vadd.f32 %v48, %v52
    %v54 = vlaneseq
    %v55 = vshrl.u32 %v54, 7
    %57 = vset.pattern.permute.xlu0 127
    %58 = vperm.xlu0 %57, %v53
    %v59 = vpop.permute.xlu0 %58
    %vm61 = vcmp.ge.s32.totalorder %v55, 1
    %v62 = vrot.slane %v59, 7
    %v63 = vsel %vm61, %v62, 0.0
    %v64 = vrot.slane %v63, 7
    %v65 = vsel %vm61, %v64, 0.0
    %v66 = vadd.f32 %v63, %v65
    %v67 = vrot.slane %v66, 6
    %vm68 = vcmp.ge.s32.totalorder %v55, 2
    %v69 = vsel %vm68, %v67, 0.0
    %v70 = vadd.f32 %v66, %v69
    %v71 = vrot.slane %v70, 4
    %vm72 = vcmp.ge.s32.totalorder %v55, 4
    %v73 = vsel %vm72, %v71, 0.0
    %v74 = vadd.f32 %v70, %v73
    %v75 = vadd.f32 %v53, %v74
    %vm76 = vcmp.gt.f32.partialorder %v75, 0.0
    %v77 = vsel %vm76, %v75, 1.0
    %v78 = vlog2.pop %v77
    %v79 = vmul.f32 %v78, 0.6931472
    %v80 = vsub.f32 %v13, %v79
    %v81 = vmul.f32 %v14, %v80
    %82 = vadd.xlane.f32.xlu0 %v81
    %v83 = vpop.xlane.xlu0 %82
    %v84 = vrot.slane %v83, 4
    %v85 = vadd.f32 %v83, %v84
    %v86 = vrot.slane %v85, 2
    %v87 = vadd.f32 %v85, %v86
    %v88 = vrot.slane %v87, 1
    %v89 = vadd.f32 %v87, %v88
    %s90 = vtos %v89
    %s91 = sld [smem:[#allocation2]]
    %s92 = scvt.s32.f32 %s91
    %s93 = smax.f32 %s92, 1.0
    %p94 = scmp.gt.s32.totalorder %s91, 0
    %s95 = ssub.f32 0.0, %s90
    %v96 = vstv %s93
    %v97 = vrcp.pop %v96
    %s98 = vtos %v97
    %s99 = smul.f32 %s95, %s98
    %s100 = scalar_select %p94, %s99, 0.0
    %s101 = scalar_lea.smem [#allocation3], 0
    %102 = sst [smem:[%s101]] %s100
    // Predicated region
    $region10: #{coxph_loss.1} parent=1 // pred_check
      _
    $region11: #{coxph_loss.1} parent=1 // pred_check_branch
      %104 = sbr.rel (0) target = $region13
    $region12: #{coxph_loss.1} parent=1 // pred_region
      %s106 = ssub.s32 16, 16
      %107 = vsyncadd [#allocation4], %s106
      %110 = dma.smem_to_hbm [#allocation3], 16, %s2, [#allocation4]
    $region13: #{coxph_loss.1} parent=1 // pred_fallthru
      _
    // Predicated region
    $region14: #{coxph_loss.1} parent=1 // pred_check
      _
    $region15: #{coxph_loss.1} parent=1 // pred_check_branch
      %112 = sbr.rel (0) target = $region17
    $region16: #{coxph_loss.1} parent=1 // pred_region
      %113 = dma.done [#allocation4], 16
    $region17: #{coxph_loss.1} parent=1 // pred_fallthru
      _
    %114 = sfence
    %115 = vsyncpa [#allocation4], 1

</llo_original>
